<compile_context>
chip_gen: v7x
topology: tpu7x:2x2x1
jax: 0.10.0
libtpu: 0.0.40
codegen_flags: <defaults>
</compile_context>

<pallas_src>
import math

import jax
import jax.numpy as jnp
from jax.experimental import pallas as pl
from jax.experimental.pallas import tpu as pltpu


def _copy_kernel(x_ref, o_ref):
    # Identity copy of the current (tile_rows, lanes) block — the entire
    # "compute" of a flatten is moving the row-major data into the output.
    o_ref[...] = x_ref[...]


def _choose_slab(n, dtype_bytes, vmem_budget_bytes, max_lanes=1024):
    """Pick (rows, lanes, tile_rows) for a lane-dense copy, or None."""
    lane_candidates = [l for l in (1024, 512, 256, 128)
                       if l <= max_lanes and n % l == 0]
    if not lane_candidates:
        return None

    # Prefer the widest lane count that keeps rows a multiple of 8
    # (fully packed sublanes -> unmasked vld/vst on both axes).
    lanes = None
    for l in lane_candidates:
        if (n // l) % 8 == 0:
            lanes = l
            break
    if lanes is None:
        lanes = lane_candidates[0]
    rows = n // lanes

    # Largest block whose double-buffered in+out footprint (4 * block)
    # stays under the VMEM budget.
    target_block_bytes = vmem_budget_bytes // 4
    if rows % 8 == 0:
        max_rows = max(8, min(rows,
                              (target_block_bytes // (lanes * dtype_bytes))
                              // 8 * 8))
        tile_rows = 8
        for t in range(max_rows, 7, -8):
            if rows % t == 0:
                tile_rows = t
                break
    else:
        # Block second-to-last dim must be a multiple of 8 or the full dim.
        tile_rows = rows
        if tile_rows * lanes * dtype_bytes > target_block_bytes:
            return None  # would blow VMEM; caller falls back to pure reshape
    return rows, lanes, tile_rows


def flatten_layer(x: jax.Array, *, vmem_budget_bytes: int = 8 * 1024 * 1024):
    """Pallas equivalent of FlattenLayer.forward: x.view(x.shape[0], -1)."""
    b = x.shape[0]
    f = math.prod(x.shape[1:])
    n = b * f
    dtype_bytes = jnp.dtype(x.dtype).itemsize

    slab = _choose_slab(n, dtype_bytes, vmem_budget_bytes)
    if slab is None:
        # TODO(synk): no 128-aligned lane-dense slab exists (or it would not
        # fit VMEM); the flatten is metadata-only, so return the reshape
        # rather than a masked / unpipelined copy kernel.
        return jnp.reshape(x, (b, f))

    rows, lanes, tile_rows = slab
    x_slab = jnp.reshape(x, (rows, lanes))      # metadata-only, row-major

    y_slab = pl.pallas_call(
        _copy_kernel,
        out_shape=jax.ShapeDtypeStruct((rows, lanes), x.dtype),
        grid_spec=pltpu.PrefetchScalarGridSpec(
            num_scalar_prefetch=0,
            grid=(rows // tile_rows,),
            in_specs=[pl.BlockSpec((tile_rows, lanes), lambda i: (i, 0))],
            out_specs=pl.BlockSpec((tile_rows, lanes), lambda i: (i, 0)),
        ),
        compiler_params=pltpu.CompilerParams(
            dimension_semantics=("parallel",),
        ),
    )(x_slab)

    return jnp.reshape(y_slab, (b, f))          # metadata-only, row-major


if __name__ == "__main__":
    key = jax.random.PRNGKey(0)
    # Small NCHW input consistent with typical use (conv -> flatten).
    x = jax.random.normal(key, (2, 4, 16, 16), dtype=jnp.float32)

    flatten = jax.jit(flatten_layer)
    y = jax.block_until_ready(flatten(x))

    # Reference semantics: torch's x.view(x.shape[0], -1) == row-major reshape.
    y_ref = jnp.reshape(x, (x.shape[0], -1))
    assert y.shape == (2, 4 * 16 * 16), y.shape
    assert y.dtype == x.dtype, y.dtype
    assert bool(jnp.array_equal(y, y_ref))

    print("KERNEL_OK")
</pallas_src>

<mosaic_0001>
module attributes {stable_mosaic.version = 11 : i64} {
  func.func @_copy_kernel(%arg0: i32, %arg1: memref<8x256xf32, #tpu.memory_space<vmem>>, %arg2: memref<8x256xf32, #tpu.memory_space<vmem>>) attributes {dimension_semantics = [#tpu.dimension_semantics<parallel>], iteration_bounds = array<i64: 1>, scalar_prefetch = 0 : i64, scratch_operands = 0 : i64, tpu.core_type = #tpu.core_type<tc>, window_params = [{transform_indices = @transform_0, window_bounds = array<i64: 8, 256>}, {transform_indices = @transform_1, window_bounds = array<i64: 8, 256>}]} {
    %c0 = arith.constant 0 : index
    %c0_0 = arith.constant 0 : index
    %0 = vector.load %arg1[%c0, %c0_0] : memref<8x256xf32, #tpu.memory_space<vmem>>, vector<8x256xf32>
    %c0_1 = arith.constant 0 : index
    %c0_2 = arith.constant 0 : index
    %1 = vector.load %arg2[%c0_1, %c0_2] : memref<8x256xf32, #tpu.memory_space<vmem>>, vector<8x256xf32>
    tpu.vector_store %arg2[%c0_1, %c0_2], %0 {strides = array<i32>} : memref<8x256xf32, #tpu.memory_space<vmem>>, vector<8x256xf32>,
    return
  }
  func.func @transform_0(%arg0: i32) -> (i32, i32) {
    %c0_i32 = arith.constant 0 : i32
    %c0_i32_0 = arith.constant 0 : i32
    return %arg0, %c0_i32 : i32, i32
  }
  func.func @transform_1(%arg0: i32) -> (i32, i32) {
    %c0_i32 = arith.constant 0 : i32
    %c0_i32_0 = arith.constant 0 : i32
    return %arg0, %c0_i32 : i32, i32
  }
}

</mosaic_0001>

<llo_original>
// kernel: flatten_layer.1
$region0: #{flatten_layer.1}
  #allocation0 [shape = 'u32[]', space=smem, size = 0x4, offset = 0x4, fixed_abs, tag = 'smem constant byte address 0x4 - core index']
  #allocation1 [shape = 'u32[144,128]{1,0:T(1,128)}', space=vmem, size = 0x12000, scoped, tag = 'internal scratch']
  %s0 = inlined_call_operand.vmem [shape: f32[8,256], index: 0, kind: input, shape index: {}]
  %s1 = inlined_call_operand.vmem [shape: f32[8,256], index: 1, kind: output, shape index: {}]
  %s2 = sld [smem:[#allocation0]]
  $region14: #{flatten_layer.1} parent=0
    _
  %s4 = ssub.s32 1, %s2
  %s5 = scalar_select 0, %s4, %s2
  // Predicated region
  $region2: #{flatten_layer.1} parent=0 // pred_check
    _
  $region3: #{flatten_layer.1} parent=0 // pred_check_branch
    %7 = sbr.rel (0) target = $region5
  $region4: #{flatten_layer.1} parent=0 // pred_region
    _
  $region5: #{flatten_layer.1} parent=0 // pred_fallthru
    _
  %v8 = vld [vmem:[%s0] sm:$0xff]
  %v9 = vld [vmem:[%s0 + $0x8] sm:$0xff]
  %10 = vst [vmem:[%s1] sm:$0xff] %v8
  %11 = vst [vmem:[%s1 + $0x8] sm:$0xff] %v9
  // Predicated region
  $region6: #{flatten_layer.1} parent=0 // pred_check
    _
  $region7: #{flatten_layer.1} parent=0 // pred_check_branch
    %13 = sbr.rel (0) target = $region9
  $region8: #{flatten_layer.1} parent=0 // pred_region
    _
  $region9: #{flatten_layer.1} parent=0 // pred_fallthru
    _
  // Predicated region
  $region10: #{flatten_layer.1} parent=0 // pred_check
    _
  $region11: #{flatten_layer.1} parent=0 // pred_check_branch
    %15 = sbr.rel (0) target = $region13
  $region12: #{flatten_layer.1} parent=0 // pred_region
    _
  $region13: #{flatten_layer.1} parent=0 // pred_fallthru
    _

</llo_original>
